<compile_context>
chip_gen: v7x
topology: tpu7x:2x2x1
jax: 0.10.0
libtpu: 0.0.40
codegen_flags: <defaults>
</compile_context>

<pallas_src>
import functools
import math

import jax
import jax.numpy as jnp
from jax.experimental import pallas as pl
from jax.experimental.pallas import tpu as pltpu


_VMEM_BUDGET = 24 * 1024 * 1024      # budget for the x in+out double buffers
_VMEM_LIMIT = 48 * 1024 * 1024       # scoped VMEM limit handed to Mosaic


def _hash_u32(z):
    """splitmix32-style avalanche (lowbias32); decorrelates sequential counters."""
    z = (z ^ (z >> 16)) * jnp.uint32(0x7FEB352D)
    z = (z ^ (z >> 15)) * jnp.uint32(0x846CA68B)
    return z ^ (z >> 16)


def _shared_dropout_kernel(seed_ref, x_ref, o_ref, *, p, tB, H):
    # x_ref / o_ref: (tB, tS, H) VMEM tile.
    keep = 1.0 - p
    inv_keep = 1.0 / keep
    # keep < 1 here (p > 0 guaranteed by the wrapper), so threshold fits in u32.
    thresh = jnp.uint32(min(int(keep * (1 << 32)), (1 << 32) - 1))

    # Global (batch, hidden) indices for this tile; independent of the seq tile
    # index, so the mask is identical across seq tiles of the same batch row.
    b0 = (pl.program_id(0) * tB).astype(jnp.uint32)
    rows = jax.lax.broadcasted_iota(jnp.int32, (tB, H), 0).astype(jnp.uint32) + b0
    cols = jax.lax.broadcasted_iota(jnp.int32, (tB, H), 1).astype(jnp.uint32)
    ctr = rows * jnp.uint32(H) + cols
    bits = _hash_u32(ctr + seed_ref[0].astype(jnp.uint32) * jnp.uint32(0x9E3779B9))

    # Integer threshold compare: P(bits < thresh) == keep.  No float conversion
    # of the random bits needed.
    mask = jnp.where(bits < thresh, inv_keep, 0.0).astype(x_ref.dtype)   # (tB, H)

    # Broadcast the per-(batch, hidden) mask over the seq axis (shared dropout).
    o_ref[...] = x_ref[...] * mask[:, None, :]


def _pick_tiles(B, S, H, itemsize):
    """Choose (tB, tS) so in+out double-buffered tiles stay under the budget."""
    per_row = 4 * H * itemsize                      # in+out, double-buffered
    if S * per_row <= _VMEM_BUDGET:
        tS = S
    else:
        # Seq tile must be a multiple of 8 (sublane) when it isn't the full S.
        tS = min(S, max(8, (_VMEM_BUDGET // per_row) // 8 * 8))
    tB = 1
    if tS == S:
        # Small per-batch slab: pack several batch elements per grid step.
        cap = max(1, _VMEM_BUDGET // max(1, S * per_row))
        for d in range(min(B, cap), 0, -1):         # largest divisor of B <= cap
            if B % d == 0:
                tB = d
                break
    return tB, tS


def shared_dropout(x, *, seed=0, p=0.5, batch_first=True, training=True,
                   donate_input=False):
    """SharedDropout forward. x: [batch, seq_len, *] when batch_first."""
    if (not training) or p <= 0.0:
        return x
    if p >= 1.0:
        return jnp.zeros_like(x)
    if not batch_first:
        # TODO(synk): batch_first=False ([seq, batch, *]) layout not wired up;
        # only the default batch_first=True configuration is implemented.
        raise NotImplementedError("batch_first=False not implemented")
    if x.ndim < 2:
        raise ValueError("SharedDropout expects x with ndim >= 2")

    orig_shape = x.shape
    B, S = x.shape[0], x.shape[1]
    H = math.prod(x.shape[2:]) if x.ndim > 2 else 1
    x3 = x.reshape(B, S, H)

    itemsize = jnp.dtype(x.dtype).itemsize
    tB, tS = _pick_tiles(B, S, H, itemsize)
    grid = (pl.cdiv(B, tB), pl.cdiv(S, tS))

    seed_arr = jnp.asarray([seed], dtype=jnp.int32)
    kernel = functools.partial(_shared_dropout_kernel, p=float(p), tB=tB, H=H)

    out = pl.pallas_call(
        kernel,
        out_shape=jax.ShapeDtypeStruct((B, S, H), x.dtype),
        grid_spec=pltpu.PrefetchScalarGridSpec(
            num_scalar_prefetch=1,                  # seed lands in SMEM
            grid=grid,
            in_specs=[pl.BlockSpec((tB, tS, H), lambda i, j, seed: (i, j, 0))],
            out_specs=pl.BlockSpec((tB, tS, H), lambda i, j, seed: (i, j, 0)),
        ),
        compiler_params=pltpu.CompilerParams(
            dimension_semantics=("parallel", "arbitrary"),
            vmem_limit_bytes=_VMEM_LIMIT),
        cost_estimate=pl.CostEstimate(
            flops=B * S * H,
            transcendentals=0,
            bytes_accessed=2 * B * S * H * itemsize),
        # Operand 0 is the scalar-prefetch seed; x is operand 1.
        input_output_aliases=({1: 0} if donate_input else {}),
    )(seed_arr, x3)

    return out.reshape(orig_shape)


if __name__ == "__main__":
    import numpy as np

    key = jax.random.PRNGKey(0)
    B, S, H = 2, 8, 32
    p = 0.5

    x = jax.random.normal(key, (B, S, H), dtype=jnp.float32)

    out = shared_dropout(x, seed=0, p=p, batch_first=True, training=True)
    out = jax.block_until_ready(out)

    out_np = np.asarray(out)
    x_np = np.asarray(x)
    assert out_np.shape == x_np.shape

    # Mask recovered exactly: scale 1/(1-p) = 2.0 is a power of two.
    mask = out_np / x_np
    m0 = mask[:, :1, :]
    assert np.allclose(mask, np.broadcast_to(m0, mask.shape)), \
        "dropout mask is not shared across the seq dimension"
    vals = set(np.unique(np.round(m0, 4)).tolist())
    assert vals <= {0.0, round(1.0 / (1.0 - p), 4)}, vals
    keep_frac = float((m0 != 0.0).mean())
    assert 0.1 < keep_frac < 0.9, keep_frac     # statistical sanity at p=0.5

    # Eval mode is identity.
    assert np.array_equal(np.asarray(shared_dropout(x, p=p, training=False)), x_np)

    print("KERNEL_OK")
</pallas_src>

<mosaic_0001>
module attributes {stable_mosaic.version = 11 : i64} {
  func.func @_shared_dropout_kernel(%arg0: i32, %arg1: i32, %arg2: memref<1xi32, #tpu.memory_space<smem>>, %arg3: memref<2x8x32xf32, #tpu.memory_space<vmem>>, %arg4: memref<2x8x32xf32, #tpu.memory_space<vmem>>) attributes {dimension_semantics = [#tpu.dimension_semantics<parallel>, #tpu.dimension_semantics<arbitrary>], iteration_bounds = array<i64: 1, 1>, scalar_prefetch = 1 : i64, scratch_operands = 0 : i64, tpu.core_type = #tpu.core_type<tc>, window_params = [{transform_indices = @transform_0, window_bounds = array<i64: 2, 8, 32>}, {transform_indices = @transform_1, window_bounds = array<i64: 2, 8, 32>}]} {
    %c2_i32 = arith.constant 2 : i32
    %0 = arith.muli %arg0, %c2_i32 : i32
    %1 = tpu.iota {dimensions = array<i32: 0>} : vector<2x32xi32>
    %2 = vector.broadcast %0 : i32 to vector<2x32xi32>
    %3 = arith.addi %1, %2 : vector<2x32xi32>
    %4 = tpu.iota {dimensions = array<i32: 1>} : vector<2x32xi32>
    %c32_i32 = arith.constant 32 : i32
    %5 = vector.broadcast %c32_i32 : i32 to vector<2x32xi32>
    %6 = arith.muli %3, %5 : vector<2x32xi32>
    %7 = arith.addi %6, %4 : vector<2x32xi32>
    %c0 = arith.constant 0 : index
    %8 = memref.load %arg2[%c0] : memref<1xi32, #tpu.memory_space<smem>>
    %c-1640531527_i32 = arith.constant -1640531527 : i32
    %9 = arith.muli %8, %c-1640531527_i32 : i32
    %10 = vector.broadcast %9 : i32 to vector<2x32xi32>
    %11 = arith.addi %7, %10 : vector<2x32xi32>
    %c16_i32 = arith.constant 16 : i32
    %12 = vector.broadcast %c16_i32 : i32 to vector<2x32xi32>
    %13 = arith.shrui %11, %12 : vector<2x32xi32>
    %14 = arith.xori %11, %13 : vector<2x32xi32>
    %c2146121005_i32 = arith.constant 2146121005 : i32
    %15 = vector.broadcast %c2146121005_i32 : i32 to vector<2x32xi32>
    %16 = arith.muli %14, %15 : vector<2x32xi32>
    %c15_i32 = arith.constant 15 : i32
    %17 = vector.broadcast %c15_i32 : i32 to vector<2x32xi32>
    %18 = arith.shrui %16, %17 : vector<2x32xi32>
    %19 = arith.xori %16, %18 : vector<2x32xi32>
    %c-2073254261_i32 = arith.constant -2073254261 : i32
    %20 = vector.broadcast %c-2073254261_i32 : i32 to vector<2x32xi32>
    %21 = arith.muli %19, %20 : vector<2x32xi32>
    %c16_i32_0 = arith.constant 16 : i32
    %22 = vector.broadcast %c16_i32_0 : i32 to vector<2x32xi32>
    %23 = arith.shrui %21, %22 : vector<2x32xi32>
    %24 = arith.xori %21, %23 : vector<2x32xi32>
    %c-2147483648_i32 = arith.constant -2147483648 : i32
    %25 = vector.broadcast %c-2147483648_i32 : i32 to vector<2x32xi32>
    %26 = arith.cmpi ult, %24, %25 : vector<2x32xi32>
    %cst = arith.constant 2.000000e+00 : f32
    %cst_1 = arith.constant 0.000000e+00 : f32
    %27 = vector.broadcast %cst : f32 to vector<2x32xf32>
    %28 = vector.broadcast %cst_1 : f32 to vector<2x32xf32>
    %29 = arith.select %26, %27, %28 : vector<2x32xi1>, vector<2x32xf32>
    %c0_2 = arith.constant 0 : index
    %c0_3 = arith.constant 0 : index
    %c0_4 = arith.constant 0 : index
    %30 = vector.load %arg3[%c0_2, %c0_3, %c0_4] : memref<2x8x32xf32, #tpu.memory_space<vmem>>, vector<2x8x32xf32>
    %31 = vector.shape_cast %29 : vector<2x32xf32> to vector<2x1x32xf32>
    %32 = vector.broadcast %31 : vector<2x1x32xf32> to vector<2x8x32xf32>
    %33 = arith.mulf %30, %32 : vector<2x8x32xf32>
    %c0_5 = arith.constant 0 : index
    %c0_6 = arith.constant 0 : index
    %c0_7 = arith.constant 0 : index
    %34 = vector.load %arg4[%c0_5, %c0_6, %c0_7] : memref<2x8x32xf32, #tpu.memory_space<vmem>>, vector<2x8x32xf32>
    tpu.vector_store %arg4[%c0_5, %c0_6, %c0_7], %33 {strides = array<i32>} : memref<2x8x32xf32, #tpu.memory_space<vmem>>, vector<2x8x32xf32>,
    return
  }
  func.func @transform_0(%arg0: i32, %arg1: i32, %arg2: memref<1xi32, #tpu.memory_space<smem>>) -> (i32, i32, i32) {
    %c0_i32 = arith.constant 0 : i32
    %c0_i32_0 = arith.constant 0 : i32
    return %arg0, %arg1, %c0_i32 : i32, i32, i32
  }
  func.func @transform_1(%arg0: i32, %arg1: i32, %arg2: memref<1xi32, #tpu.memory_space<smem>>) -> (i32, i32, i32) {
    %c0_i32 = arith.constant 0 : i32
    %c0_i32_0 = arith.constant 0 : i32
    return %arg0, %arg1, %c0_i32 : i32, i32, i32
  }
}

</mosaic_0001>

<llo_original>
// kernel: tpu_custom_call.1
$region0: #{tpu_custom_call.1}
  #allocation0 [shape = 'u32[]', space=smem, size = 0x4, offset = 0x4, fixed_abs, tag = 'smem constant byte address 0x4 - core index']
  #allocation1 [shape = 'u32[144,128]{1,0:T(1,128)}', space=vmem, size = 0x12000, scoped, tag = 'internal scratch']
  #allocation2 [shape = 's32[1]{0}', space=sflag, size = 0x4, scoped, tag = 'scoped memory for tpu_custom_call.1']
  #allocation3 [shape = 's32[1]{0:T(128)S(6)}', space=smem, size = 0x200, scoped, tag = 'prefetched SMEM operand 0']
  %s0 = inlined_call_operand.<no memory space> [shape: s32[1], index: 0, kind: input, shape index: {}]
  %s1 = inlined_call_operand.hbm [shape: f32[2,8,32], index: 1, kind: input, shape index: {}]
  %s2 = inlined_call_operand.hbm [shape: f32[2,8,32], index: 2, kind: output, shape index: {}]
  %s3 = sld [smem:[#allocation0]]
  $region18: #{tpu_custom_call.1} parent=0
    _
  %s5 = ssub.s32 1, %s3
  %s6 = scalar_select 0, %s5, %s3
  %7 = sst [smem:[#allocation3]] %s0
  $region1: #{tpu_custom_call.1} parent=0
    #allocation4 [shape = 'u8[8192]{0}', space=vmem, size = 0x2000, scoped, tag = 'input window, operand 1, single buffered']
    #allocation5 [shape = 's32[1]{0}', space=sflag, size = 0x4, scoped, tag = 'scoped memory for tpu_custom_call.1']
    #allocation6 [shape = 's32[1]{0}', space=sflag, size = 0x4, scoped, tag = 'scoped memory for tpu_custom_call.1']
    #allocation7 [shape = 'u8[8192]{0}', space=vmem, size = 0x2000, scoped, tag = 'output window, operand 0, single buffered']
    %8 = vsyncpa [#allocation5], 0
    %9 = vsyncpa [#allocation6], 0
    // Predicated region
    $region2: #{tpu_custom_call.1} parent=1 // pred_check
      _
    $region3: #{tpu_custom_call.1} parent=1 // pred_check_branch
      %11 = sbr.rel (0) target = $region5
    $region4: #{tpu_custom_call.1} parent=1 // pred_region
      %s13 = ssub.s32 256, 256
      %14 = vsyncadd [#allocation5], %s13
      %s15 = sshll.u32 [#allocation4], 4
      %s16 = int_to_ptr.vmem [resolvable:$true] %s15
      %21 = dma.hbm_to_vmem [thread:$0]  %s1, 256, %s16, [#allocation5], 128, 128, 8
    $region5: #{tpu_custom_call.1} parent=1 // pred_fallthru
      _
    // Predicated region
    $region6: #{tpu_custom_call.1} parent=1 // pred_check
      _
    $region7: #{tpu_custom_call.1} parent=1 // pred_check_branch
      %23 = sbr.rel (0) target = $region9
    $region8: #{tpu_custom_call.1} parent=1 // pred_region
      %24 = dma.done [#allocation5], 256
    $region9: #{tpu_custom_call.1} parent=1 // pred_fallthru
      _
    %s25 = smul.u32 0, 2
    %v26 = vlaneseq
    %v27 = vshrl.u32 %v26, 7
    %v28 = vstv %s25
    %v29 = vadd.s32 %v27, %v28
    %v30 = vlaneseq
    %v31 = vand.u32 %v30, 127
    %v32 = vmul.u32 %v29, 32
    %v33 = vadd.s32 %v32, %v31
    %s34 = sld [smem:[#allocation3]]
    %s35 = smul.u32 %s34, 2654435769
    %v36 = vstv %s35
    %v37 = vadd.s32 %v33, %v36
    %v38 = vshrl.u32 %v37, 16
    %v39 = vxor.u32 %v37, %v38
    %v40 = vmul.u32 %v39, 2146121005
    %v41 = vshrl.u32 %v40, 15
    %v42 = vxor.u32 %v40, %v41
    %v43 = vmul.u32 %v42, 2221713035
    %v44 = vshrl.u32 %v43, 16
    %v45 = vxor.u32 %v43, %v44
    %vm46 = vcmp.lt.u32.totalorder %v45, 2147483648
    %v47 = vsel %vm46, 2.0, 0.0
    %v48 = vld [vmem:[#allocation4] sm:$0xff]
    %v49 = vld [vmem:[#allocation4 + $0x8] sm:$0xff]
    %v52 = vunpack.c.l.s4 1966171168
    %v53 = vunpack.c.0.s8 %v52
    %v54 = vlaneseq
    %v55 = vshrl.u32 %v54, 7
    %v56 = vsub.s32 %v53, %v55
    %v57 = vrot.slane %v47, %v56
    %v58 = vcombine.high %v57, %v57
    %v60 = vunpack.c.l.s4 1966171168
    %v61 = vunpack.c.0.s8 %v60
    %v62 = vlaneseq
    %v63 = vshrl.u32 %v62, 7
    %v64 = vsub.s32 %v61, %v63
    %v65 = vrot.slane %v57, %v64
    %v67 = vunpack.c.l.s4 1966171168
    %v68 = vunpack.c.0.s8 %v67
    %v69 = vlaneseq
    %v70 = vshrl.u32 %v69, 7
    %v71 = vsub.s32 %v68, %v70
    %v72 = vrot.slane %v58, %v71
    %v73 = vlaneseq
    %v74 = vshrl.u32 %v73, 7
    %v75 = vsub.s32 0, %v74
    %v76 = vrot.slane %v65, %v75
    %v77 = vlaneseq
    %v78 = vshrl.u32 %v77, 7
    %v79 = vsub.s32 0, %v78
    %v80 = vrot.slane %v72, %v79
    %v83 = vmul.f32 %v48, %v76
    %v84 = vmul.f32 %v49, %v80
    %vm85 = vcmask 261120
    %86 = vst.msk [vmem:[#allocation7] sm:$0xff] %vm85, %v83
    %87 = vst.msk [vmem:[#allocation7 + $0x8] sm:$0xff] %vm85, %v84
    // Predicated region
    $region10: #{tpu_custom_call.1} parent=1 // pred_check
      _
    $region11: #{tpu_custom_call.1} parent=1 // pred_check_branch
      %89 = sbr.rel (0) target = $region13
    $region12: #{tpu_custom_call.1} parent=1 // pred_region
      %s91 = ssub.s32 256, 256
      %92 = vsyncadd [#allocation6], %s91
      %s93 = sshll.u32 [#allocation7], 4
      %s94 = int_to_ptr.vmem [resolvable:$true] %s93
      %99 = dma.vmem_to_hbm [thread:$0]  %s94, 256, %s2, [#allocation6], 128, 128, 8
    $region13: #{tpu_custom_call.1} parent=1 // pred_fallthru
      _
    // Predicated region
    $region14: #{tpu_custom_call.1} parent=1 // pred_check
      _
    $region15: #{tpu_custom_call.1} parent=1 // pred_check_branch
      %101 = sbr.rel (0) target = $region17
    $region16: #{tpu_custom_call.1} parent=1 // pred_region
      %102 = dma.done [#allocation6], 256
    $region17: #{tpu_custom_call.1} parent=1 // pred_fallthru
      _
    %103 = vsyncpa [#allocation5], 1
    %104 = vsyncpa [#allocation6], 1

</llo_original>
